<compile_context>
chip_gen: v7x
topology: tpu7x:2x2x1
jax: 0.10.0
libtpu: 0.0.40
codegen_flags: <defaults>
</compile_context>

<pallas_src>
import functools

import numpy as np
import jax
import jax.numpy as jnp
from jax import lax
from jax.experimental import pallas as pl
from jax.experimental.pallas import tpu as pltpu

CONF_THRES = 0.25
IOU_THRES = 0.45
MAX_WH = 4096.0   # class offset for class-aware NMS (yolov5 trick)


# ----------------------------------------------------------------------------
# Kernel 1: per-image candidate decode
# ----------------------------------------------------------------------------
def _decode_kernel(x_ref, o_ref, *, conf_thres, nc):
    """x_ref: (5+nc, N) rows [cx, cy, w, h, obj, cls_0..]; boxes on lanes.
    o_ref: (8, N) rows [x1, y1, x2, y2, score, cls, 0, 0]; score = -1 if not a candidate."""
    x = x_ref[...].astype(jnp.float32)
    cx, cy, w, h = x[0:1, :], x[1:2, :], x[2:3, :], x[3:4, :]
    obj = x[4:5, :]

    # best class with first-max tie-break (== argmax), unrolled over tiny nc (pure VPU)
    best = x[5:6, :] * obj
    cls = jnp.zeros_like(best)
    for c in range(1, nc):
        sc = x[5 + c:6 + c, :] * obj
        upd = sc > best
        best = jnp.where(upd, sc, best)
        cls = jnp.where(upd, jnp.float32(c), cls)

    valid = (obj > conf_thres) & (best > conf_thres)
    score = jnp.where(valid, best, jnp.float32(-1.0))

    hw, hh = 0.5 * w, 0.5 * h
    o_ref[0:1, :] = cx - hw
    o_ref[1:2, :] = cy - hh
    o_ref[2:3, :] = cx + hw
    o_ref[3:4, :] = cy + hh
    o_ref[4:5, :] = score
    o_ref[5:6, :] = cls
    o_ref[6:8, :] = jnp.zeros((2, score.shape[1]), jnp.float32)


# ----------------------------------------------------------------------------
# Kernel 2: greedy class-aware NMS over score-sorted candidates (one image)
# ----------------------------------------------------------------------------
def _nms_kernel(dr_ref, dc_ref, o_ref, iou_ref, *, iou_thres, max_wh):
    """dr_ref: (8, N) sorted detections, boxes on lanes (row layout).
    dc_ref: (N, 8) same data, boxes on sublanes (column layout; avoids in-kernel transpose).
    o_ref : (8, N) [x1, y1, x2, y2, conf, cls, keep, 0]; suppressed/invalid rows zeroed.
    iou_ref: (N, N) VMEM scratch; iou_ref[i, j] = IoU(box_i, box_j) with class offsets."""
    N = dr_ref.shape[1]
    TR = 8

    cls_r = dr_ref[5:6, :]
    off_r = cls_r * max_wh
    x1r = dr_ref[0:1, :] + off_r
    y1r = dr_ref[1:2, :] + off_r
    x2r = dr_ref[2:3, :] + off_r
    y2r = dr_ref[3:4, :] + off_r
    area_r = jnp.maximum(x2r - x1r, 0.0) * jnp.maximum(y2r - y1r, 0.0)   # (1, N)

    # ---- pairwise IoU matrix, built in aligned (8, N) sublane tiles into VMEM scratch ----
    def iou_tile(g, carry):
        r0 = pl.multiple_of(g * TR, TR)
        col = dc_ref[pl.ds(r0, TR), :]                 # (TR, 8)
        off_c = col[:, 5:6] * max_wh                   # (TR, 1)
        x1c = col[:, 0:1] + off_c
        y1c = col[:, 1:2] + off_c
        x2c = col[:, 2:3] + off_c
        y2c = col[:, 3:4] + off_c
        area_c = jnp.maximum(x2c - x1c, 0.0) * jnp.maximum(y2c - y1c, 0.0)
        iw = jnp.maximum(jnp.minimum(x2c, x2r) - jnp.maximum(x1c, x1r), 0.0)
        ih = jnp.maximum(jnp.minimum(y2c, y2r) - jnp.maximum(y1c, y1r), 0.0)
        inter = iw * ih
        union = jnp.maximum(area_c + area_r - inter, 1e-9)
        iou_ref[pl.ds(r0, TR), :] = inter / union
        return carry

    lax.fori_loop(0, N // TR, iou_tile, 0, unroll=False)

    # ---- sequential greedy suppression (boxes already sorted by descending score) ----
    lane = lax.broadcasted_iota(jnp.int32, (1, N), 1)   # hoisted out of the loop

    def group(g, keep):
        r0 = pl.multiple_of(g * TR, TR)
        rows = iou_ref[pl.ds(r0, TR), :]                # one aligned (8, N) load per group
        for r in range(TR):                             # unrolled: visible to the scheduler
            i = g * TR + r
            sup = jnp.max(keep * rows[r:r + 1, :], keepdims=True) > iou_thres   # (1,1)
            keep_i = jnp.where(sup, 0.0, 1.0)
            keep = jnp.where(lane == i, keep_i, keep)
        return keep

    keep = lax.fori_loop(0, N // TR, group, jnp.zeros((1, N), jnp.float32), unroll=False)

    score = dr_ref[4:5, :]
    keep = keep * (score > 0.0).astype(jnp.float32)     # drop below-conf_thres padding rows
    # TODO(synk): max_det=300 cap omitted (no-op for N <= 300 candidates).

    o_ref[0:1, :] = dr_ref[0:1, :] * keep
    o_ref[1:2, :] = dr_ref[1:2, :] * keep
    o_ref[2:3, :] = dr_ref[2:3, :] * keep
    o_ref[3:4, :] = dr_ref[3:4, :] * keep
    o_ref[4:5, :] = score * keep
    o_ref[5:6, :] = cls_r * keep
    o_ref[6:7, :] = keep
    o_ref[7:8, :] = jnp.zeros_like(keep)


# ----------------------------------------------------------------------------
# Wrapper: (B, N, 5+nc) predictions -> (B, N, 6) padded detections + (B, N) keep mask
# ----------------------------------------------------------------------------
def nms_forward(pred, conf_thres=CONF_THRES, iou_thres=IOU_THRES, max_wh=MAX_WH):
    B, N, F = pred.shape
    nc = F - 5
    assert N % 128 == 0, "number of boxes must be a multiple of 128 (lane-dense layout)"
    pred = pred.astype(jnp.float32)

    # boxes -> 128-lane axis, features -> sublanes (lane-dense kernel I/O)
    x_t = jnp.transpose(pred, (0, 2, 1))                       # (B, F, N)

    dec = pl.pallas_call(
        functools.partial(_decode_kernel, conf_thres=conf_thres, nc=nc),
        out_shape=jax.ShapeDtypeStruct((B, 8, N), jnp.float32),
        grid=(B,),
        in_specs=[pl.BlockSpec((None, F, N), lambda b: (b, 0, 0))],
        out_specs=pl.BlockSpec((None, 8, N), lambda b: (b, 0, 0)),
        compiler_params=pltpu.CompilerParams(dimension_semantics=("parallel",)),
    )(x_t)

    # TODO(synk): descending-score sort + gather stay in XLA (no Pallas sort primitive);
    #             it is O(N) data next to the O(N^2) Pallas NMS.
    order = jnp.argsort(-dec[:, 4, :], axis=-1)                # (B, N), stable
    dec_sorted = jnp.take_along_axis(dec, order[:, None, :], axis=-1)    # (B, 8, N)
    dec_sorted_t = jnp.transpose(dec_sorted, (0, 2, 1))        # (B, N, 8) column layout

    out = pl.pallas_call(
        functools.partial(_nms_kernel, iou_thres=iou_thres, max_wh=max_wh),
        out_shape=jax.ShapeDtypeStruct((B, 8, N), jnp.float32),
        grid=(B,),
        in_specs=[pl.BlockSpec((None, 8, N), lambda b: (b, 0, 0)),
                  pl.BlockSpec((None, N, 8), lambda b: (b, 0, 0))],
        out_specs=pl.BlockSpec((None, 8, N), lambda b: (b, 0, 0)),
        scratch_shapes=[pltpu.VMEM((N, N), jnp.float32)],
        compiler_params=pltpu.CompilerParams(dimension_semantics=("parallel",)),
    )(dec_sorted, dec_sorted_t)

    out = jnp.transpose(out, (0, 2, 1))                        # (B, N, 8)
    return out[..., :6], out[..., 6]


# ----------------------------------------------------------------------------
# Pure numpy reference (independent of the kernels)
# ----------------------------------------------------------------------------
def _ref_nms(pred, conf_thres, iou_thres, max_wh):
    pred = np.asarray(pred, np.float32)
    B, N, _ = pred.shape
    dets = np.zeros((B, N, 6), np.float32)
    keeps = np.zeros((B, N), np.float32)
    for b in range(B):
        p = pred[b]
        obj = p[:, 4]
        cls_scores = p[:, 5:] * obj[:, None]
        cls = np.argmax(cls_scores, axis=1).astype(np.float32)
        best = np.max(cls_scores, axis=1)
        valid = (obj > conf_thres) & (best > conf_thres)
        score = np.where(valid, best, -1.0).astype(np.float32)
        hw, hh = 0.5 * p[:, 2], 0.5 * p[:, 3]
        x1, y1 = p[:, 0] - hw, p[:, 1] - hh
        x2, y2 = p[:, 0] + hw, p[:, 1] + hh
        order = np.argsort(-score, kind="stable")
        sx1, sy1, sx2, sy2 = x1[order], y1[order], x2[order], y2[order]
        sscore, scls = score[order], cls[order]
        off = scls * max_wh
        bx1, by1, bx2, by2 = sx1 + off, sy1 + off, sx2 + off, sy2 + off
        areas = np.maximum(bx2 - bx1, 0) * np.maximum(by2 - by1, 0)
        keep = np.zeros(N, np.float32)
        for i in range(N):
            iw = np.maximum(np.minimum(bx2[i], bx2) - np.maximum(bx1[i], bx1), 0)
            ih = np.maximum(np.minimum(by2[i], by2) - np.maximum(by1[i], by1), 0)
            inter = iw * ih
            union = np.maximum(areas[i] + areas - inter, np.float32(1e-9))
            keep[i] = 0.0 if np.max(keep * (inter / union)) > iou_thres else 1.0
        keep = keep * (sscore > 0)
        dets[b, :, 0] = sx1 * keep
        dets[b, :, 1] = sy1 * keep
        dets[b, :, 2] = sx2 * keep
        dets[b, :, 3] = sy2 * keep
        dets[b, :, 4] = sscore * keep
        dets[b, :, 5] = scls * keep
        keeps[b] = keep
    return dets, keeps


if __name__ == "__main__":
    # NMS over x[0]: (batch, num_boxes, 5 + num_classes) raw predictions.
    B, N, nc = 2, 256, 3
    key = jax.random.PRNGKey(0)
    kxy, kwh, kobj, kcls = jax.random.split(key, 4)
    xy = jax.random.uniform(kxy, (B, N, 2), jnp.float32, 0.0, 320.0)
    wh = jax.random.uniform(kwh, (B, N, 2), jnp.float32, 8.0, 96.0)
    obj = jax.random.uniform(kobj, (B, N, 1), jnp.float32, 0.0, 1.0)
    cls = jax.random.uniform(kcls, (B, N, nc), jnp.float32, 0.0, 1.0)
    pred = jnp.concatenate([xy, wh, obj, cls], axis=-1)        # (B, N, 5+nc)

    dets, keep = nms_forward(pred)
    dets = jax.block_until_ready(dets)
    keep = jax.block_until_ready(keep)

    ref_dets, ref_keep = _ref_nms(pred, CONF_THRES, IOU_THRES, MAX_WH)

    assert dets.shape == (B, N, 6) and keep.shape == (B, N), (dets.shape, keep.shape)
    assert np.array_equal(np.asarray(keep), ref_keep), "keep mask mismatch vs reference"
    max_err = float(np.max(np.abs(np.asarray(dets) - ref_dets)))
    assert max_err < 5e-3, f"mismatch vs reference: {max_err}"
    print("KERNEL_OK")
</pallas_src>

<mosaic_0001>
module attributes {stable_mosaic.version = 11 : i64} {
  func.func @_decode_kernel(%arg0: i32, %arg1: memref<1x8x256xf32, #tpu.memory_space<vmem>>, %arg2: memref<1x8x256xf32, #tpu.memory_space<vmem>>) attributes {dimension_semantics = [#tpu.dimension_semantics<parallel>], iteration_bounds = array<i64: 2>, scalar_prefetch = 0 : i64, scratch_operands = 0 : i64, tpu.core_type = #tpu.core_type<tc>, window_params = [{transform_indices = @transform_0, window_bounds = array<i64: 1, 8, 256>}, {transform_indices = @transform_1, window_bounds = array<i64: 1, 8, 256>}]} {
    %c0 = arith.constant 0 : index
    %c0_0 = arith.constant 0 : index
    %c0_1 = arith.constant 0 : index
    %0 = vector.load %arg1[%c0, %c0_0, %c0_1] : memref<1x8x256xf32, #tpu.memory_space<vmem>>, vector<1x8x256xf32>
    %1 = vector.shape_cast %0 : vector<1x8x256xf32> to vector<8x256xf32>
    %2 = vector.extract_strided_slice %1 {offsets = [0, 0], sizes = [1, 256], strides = [1, 1]} : vector<8x256xf32> to vector<1x256xf32>
    %3 = vector.extract_strided_slice %1 {offsets = [1, 0], sizes = [1, 256], strides = [1, 1]} : vector<8x256xf32> to vector<1x256xf32>
    %4 = vector.extract_strided_slice %1 {offsets = [2, 0], sizes = [1, 256], strides = [1, 1]} : vector<8x256xf32> to vector<1x256xf32>
    %5 = vector.extract_strided_slice %1 {offsets = [3, 0], sizes = [1, 256], strides = [1, 1]} : vector<8x256xf32> to vector<1x256xf32>
    %6 = vector.extract_strided_slice %1 {offsets = [4, 0], sizes = [1, 256], strides = [1, 1]} : vector<8x256xf32> to vector<1x256xf32>
    %7 = vector.extract_strided_slice %1 {offsets = [5, 0], sizes = [1, 256], strides = [1, 1]} : vector<8x256xf32> to vector<1x256xf32>
    %8 = arith.mulf %7, %6 : vector<1x256xf32>
    %cst = arith.constant 0.000000e+00 : f32
    %9 = vector.broadcast %cst : f32 to vector<1x256xf32>
    %10 = vector.extract_strided_slice %1 {offsets = [6, 0], sizes = [1, 256], strides = [1, 1]} : vector<8x256xf32> to vector<1x256xf32>
    %11 = arith.mulf %10, %6 : vector<1x256xf32>
    %12 = arith.cmpf ogt, %11, %8 : vector<1x256xf32>
    %13 = arith.select %12, %11, %8 : vector<1x256xi1>, vector<1x256xf32>
    %cst_2 = arith.constant 1.000000e+00 : f32
    %14 = vector.broadcast %cst_2 : f32 to vector<1x256xf32>
    %15 = arith.select %12, %14, %9 : vector<1x256xi1>, vector<1x256xf32>
    %16 = vector.extract_strided_slice %1 {offsets = [7, 0], sizes = [1, 256], strides = [1, 1]} : vector<8x256xf32> to vector<1x256xf32>
    %17 = arith.mulf %16, %6 : vector<1x256xf32>
    %18 = arith.cmpf ogt, %17, %13 : vector<1x256xf32>
    %19 = arith.select %18, %17, %13 : vector<1x256xi1>, vector<1x256xf32>
    %cst_3 = arith.constant 2.000000e+00 : f32
    %20 = vector.broadcast %cst_3 : f32 to vector<1x256xf32>
    %21 = arith.select %18, %20, %15 : vector<1x256xi1>, vector<1x256xf32>
    %cst_4 = arith.constant 2.500000e-01 : f32
    %22 = vector.broadcast %cst_4 : f32 to vector<1x256xf32>
    %23 = arith.cmpf ogt, %6, %22 : vector<1x256xf32>
    %cst_5 = arith.constant 2.500000e-01 : f32
    %24 = vector.broadcast %cst_5 : f32 to vector<1x256xf32>
    %25 = arith.cmpf ogt, %19, %24 : vector<1x256xf32>
    %26 = arith.andi %23, %25 : vector<1x256xi1>
    %cst_6 = arith.constant -1.000000e+00 : f32
    %27 = vector.broadcast %cst_6 : f32 to vector<1x256xf32>
    %28 = arith.select %26, %19, %27 : vector<1x256xi1>, vector<1x256xf32>
    %cst_7 = arith.constant 5.000000e-01 : f32
    %29 = vector.broadcast %cst_7 : f32 to vector<1x256xf32>
    %30 = arith.mulf %29, %4 : vector<1x256xf32>
    %cst_8 = arith.constant 5.000000e-01 : f32
    %31 = vector.broadcast %cst_8 : f32 to vector<1x256xf32>
    %32 = arith.mulf %31, %5 : vector<1x256xf32>
    %33 = arith.subf %2, %30 : vector<1x256xf32>
    %c0_9 = arith.constant 0 : index
    %c0_10 = arith.constant 0 : index
    %c0_11 = arith.constant 0 : index
    %34 = vector.load %arg2[%c0_9, %c0_10, %c0_11] : memref<1x8x256xf32, #tpu.memory_space<vmem>>, vector<1x1x256xf32>
    %35 = vector.shape_cast %34 : vector<1x1x256xf32> to vector<1x256xf32>
    %36 = vector.shape_cast %33 : vector<1x256xf32> to vector<1x1x256xf32>
    tpu.vector_store %arg2[%c0_9, %c0_10, %c0_11], %36 {strides = array<i32>} : memref<1x8x256xf32, #tpu.memory_space<vmem>>, vector<1x1x256xf32>,
    %37 = arith.subf %3, %32 : vector<1x256xf32>
    %c0_12 = arith.constant 0 : index
    %c1 = arith.constant 1 : index
    %c0_13 = arith.constant 0 : index
    %38 = vector.load %arg2[%c0_12, %c1, %c0_13] : memref<1x8x256xf32, #tpu.memory_space<vmem>>, vector<1x1x256xf32>
    %39 = vector.shape_cast %38 : vector<1x1x256xf32> to vector<1x256xf32>
    %40 = vector.shape_cast %37 : vector<1x256xf32> to vector<1x1x256xf32>
    tpu.vector_store %arg2[%c0_12, %c1, %c0_13], %40 {strides = array<i32>} : memref<1x8x256xf32, #tpu.memory_space<vmem>>, vector<1x1x256xf32>,
    %41 = arith.addf %2, %30 : vector<1x256xf32>
    %c0_14 = arith.constant 0 : index
    %c2 = arith.constant 2 : index
    %c0_15 = arith.constant 0 : index
    %42 = vector.load %arg2[%c0_14, %c2, %c0_15] : memref<1x8x256xf32, #tpu.memory_space<vmem>>, vector<1x1x256xf32>
    %43 = vector.shape_cast %42 : vector<1x1x256xf32> to vector<1x256xf32>
    %44 = vector.shape_cast %41 : vector<1x256xf32> to vector<1x1x256xf32>
    tpu.vector_store %arg2[%c0_14, %c2, %c0_15], %44 {strides = array<i32>} : memref<1x8x256xf32, #tpu.memory_space<vmem>>, vector<1x1x256xf32>,
    %45 = arith.addf %3, %32 : vector<1x256xf32>
    %c0_16 = arith.constant 0 : index
    %c3 = arith.constant 3 : index
    %c0_17 = arith.constant 0 : index
    %46 = vector.load %arg2[%c0_16, %c3, %c0_17] : memref<1x8x256xf32, #tpu.memory_space<vmem>>, vector<1x1x256xf32>
    %47 = vector.shape_cast %46 : vector<1x1x256xf32> to vector<1x256xf32>
    %48 = vector.shape_cast %45 : vector<1x256xf32> to vector<1x1x256xf32>
    tpu.vector_store %arg2[%c0_16, %c3, %c0_17], %48 {strides = array<i32>} : memref<1x8x256xf32, #tpu.memory_space<vmem>>, vector<1x1x256xf32>,
    %c0_18 = arith.constant 0 : index
    %c4 = arith.constant 4 : index
    %c0_19 = arith.constant 0 : index
    %49 = vector.load %arg2[%c0_18, %c4, %c0_19] : memref<1x8x256xf32, #tpu.memory_space<vmem>>, vector<1x1x256xf32>
    %50 = vector.shape_cast %49 : vector<1x1x256xf32> to vector<1x256xf32>
    %51 = vector.shape_cast %28 : vector<1x256xf32> to vector<1x1x256xf32>
    tpu.vector_store %arg2[%c0_18, %c4, %c0_19], %51 {strides = array<i32>} : memref<1x8x256xf32, #tpu.memory_space<vmem>>, vector<1x1x256xf32>,
    %c0_20 = arith.constant 0 : index
    %c5 = arith.constant 5 : index
    %c0_21 = arith.constant 0 : index
    %52 = vector.load %arg2[%c0_20, %c5, %c0_21] : memref<1x8x256xf32, #tpu.memory_space<vmem>>, vector<1x1x256xf32>
    %53 = vector.shape_cast %52 : vector<1x1x256xf32> to vector<1x256xf32>
    %54 = vector.shape_cast %21 : vector<1x256xf32> to vector<1x1x256xf32>
    tpu.vector_store %arg2[%c0_20, %c5, %c0_21], %54 {strides = array<i32>} : memref<1x8x256xf32, #tpu.memory_space<vmem>>, vector<1x1x256xf32>,
    %cst_22 = arith.constant 0.000000e+00 : f32
    %55 = vector.broadcast %cst_22 : f32 to vector<2x256xf32>
    %c0_23 = arith.constant 0 : index
    %c6 = arith.constant 6 : index
    %c0_24 = arith.constant 0 : index
    %56 = vector.load %arg2[%c0_23, %c6, %c0_24] : memref<1x8x256xf32, #tpu.memory_space<vmem>>, vector<1x2x256xf32>
    %57 = vector.shape_cast %56 : vector<1x2x256xf32> to vector<2x256xf32>
    %58 = vector.shape_cast %55 : vector<2x256xf32> to vector<1x2x256xf32>
    tpu.vector_store %arg2[%c0_23, %c6, %c0_24], %58 {strides = array<i32>} : memref<1x8x256xf32, #tpu.memory_space<vmem>>, vector<1x2x256xf32>,
    return
  }
  func.func @transform_0(%arg0: i32) -> (i32, i32, i32) {
    %c0_i32 = arith.constant 0 : i32
    %c0_i32_0 = arith.constant 0 : i32
    %c0_i32_1 = arith.constant 0 : i32
    return %arg0, %c0_i32, %c0_i32_0 : i32, i32, i32
  }
  func.func @transform_1(%arg0: i32) -> (i32, i32, i32) {
    %c0_i32 = arith.constant 0 : i32
    %c0_i32_0 = arith.constant 0 : i32
    %c0_i32_1 = arith.constant 0 : i32
    return %arg0, %c0_i32, %c0_i32_0 : i32, i32, i32
  }
}

</mosaic_0001>

<llo_original>
// kernel: tpu_custom_call.1
$region0: #{tpu_custom_call.1}
  #allocation0 [shape = 'u32[]', space=smem, size = 0x4, offset = 0x4, fixed_abs, tag = 'smem constant byte address 0x4 - core index']
  #allocation1 [shape = 'u32[144,128]{1,0:T(1,128)}', space=vmem, size = 0x12000, scoped, tag = 'internal scratch']
  %s0 = inlined_call_operand.hbm [shape: f32[2,8,256], index: 0, kind: input, shape index: {}]
  %s1 = inlined_call_operand.hbm [shape: f32[2,8,256], index: 1, kind: output, shape index: {}]
  %s2 = sld [smem:[#allocation0]]
  $region41: #{tpu_custom_call.1} parent=0
    _
  %s4 = ssub.s32 1, %s2
  %s5 = scalar_select 0, %s4, %s2
  $region1: #{tpu_custom_call.1} parent=0
    #allocation2 [shape = 'u8[16384]{0}', space=vmem, size = 0x4000, scoped, tag = 'input window, operand 0']
    #allocation3 [shape = 's32[2]{0}', space=sflag, size = 0x8, scoped, tag = 'scoped memory for tpu_custom_call.1']
    #allocation4 [shape = 's32[2]{0}', space=sflag, size = 0x8, scoped, tag = 'scoped memory for tpu_custom_call.1']
    #allocation5 [shape = 'u8[16384]{0}', space=vmem, size = 0x4000, scoped, tag = 'output window, operand 0']
    %6 = vsyncpa [#allocation3], 0
    %s7 = scalar_lea.sflag [#allocation3], 1
    %8 = vsyncpa %s7, 0
    %9 = vsyncpa [#allocation4], 0
    %s10 = scalar_lea.sflag [#allocation4], 1
    %11 = vsyncpa %s10, 0
    loop: start=0, step=1, limit=4
    $region2: #{tpu_custom_call.1} parent=1 // loop_pre_header
      _
    $region3: #{tpu_custom_call.1} parent=1 // loop_header
      %s13 = sphi 0, %s17
      %p14 = scmp.ge.s32.totalorder %s13, 4
      %s23 = sphi 0, %s25
      %s26 = sphi 0, %s23
      %s27 = sphi 0, %s26
      %s43 = sphi 0, %s27
      %s49 = sphi 0, %s51
      %s52 = sphi 0, %s49
      %s53 = sphi 0, %s52
      %s69 = sphi 0, %s53
    $region4: #{tpu_custom_call.1} parent=1 // loop_header_branch
      %16 = sbr.rel (%p14) target = $region8
    $region5: #{tpu_custom_call.1} parent=1 // loop_body
      %s18 = ssub.s32 %s13, 1
      %s19 = ssub.s32 %s13, 2
      %s20 = sadd.s32 %s13, 1
      %s21 = ssub.s32 %s13, %s20
      %p22 = scmp.eq.s32.totalorder %s21, 0
      %s24 = sadd.s32 %s23, 1
      %s25 = scalar_select %p22, %s23, %s24
      %p28 = pneg %p22
      %p29 = scmp.eq.s32.totalorder %s13, 1
      %p30 = por %p28, %p29
      %p31 = scmp.ne.s32.totalorder %s23, %s26
      %p32 = scmp.eq.s32.totalorder %s13, 0
      %p33 = por %p31, %p32
      %p34 = scmp.ne.s32.totalorder %s23, %s26
      %p35 = scmp.eq.s32.totalorder %s18, 1
      %p36 = por %p34, %p35
      %p37 = scmp.ne.s32.totalorder %s26, %s27
      %p38 = scmp.eq.s32.totalorder %s18, 0
      %p39 = por %p37, %p38
      %p40 = scmp.ne.s32.totalorder %s26, %s27
      %p41 = scmp.eq.s32.totalorder %s19, 1
      %p42 = por %p40, %p41
      %p44 = scmp.ne.s32.totalorder %s27, %s43
      %p45 = scmp.eq.s32.totalorder %s19, 0
      %p46 = por %p44, %p45
      %s47 = ssub.s32 %s13, %s20
      %p48 = scmp.eq.s32.totalorder %s47, 0
      %s50 = sadd.s32 %s49, 1
      %s51 = scalar_select %p48, %s49, %s50
      %p54 = pneg %p48
      %p55 = scmp.eq.s32.totalorder %s13, 1
      %p56 = por %p54, %p55
      %p57 = scmp.ne.s32.totalorder %s49, %s52
      %p58 = scmp.eq.s32.totalorder %s13, 0
      %p59 = por %p57, %p58
      %p60 = scmp.ne.s32.totalorder %s49, %s52
      %p61 = scmp.eq.s32.totalorder %s18, 1
      %p62 = por %p60, %p61
      %p63 = scmp.ne.s32.totalorder %s52, %s53
      %p64 = scmp.eq.s32.totalorder %s18, 0
      %p65 = por %p63, %p64
      %p66 = scmp.ne.s32.totalorder %s52, %s53
      %p67 = scmp.eq.s32.totalorder %s19, 1
      %p68 = por %p66, %p67
      %p70 = scmp.ne.s32.totalorder %s53, %s69
      %p71 = scmp.eq.s32.totalorder %s19, 0
      %p72 = por %p70, %p71
      %p73 = scmp.le.s32.totalorder 1, %s13
      %p74 = scmp.lt.s32.totalorder %s13, 3
      %p75 = pnand %p73, %p74
      %p76 = pneg %p75
      // Predicated region
      $region9: #{tpu_custom_call.1} parent=5 // pred_check
        _
      $region10: #{tpu_custom_call.1} parent=5 // pred_check_branch
        %78 = sbr.rel (%p75) target = $region12
      $region11: #{tpu_custom_call.1} parent=5 // pred_region
        %s79 = ssub.s32 %s13, 1
      $region12: #{tpu_custom_call.1} parent=5 // pred_fallthru
        _
      %p80 = scmp.lt.s32.totalorder %s13, 2
      // Predicated region
      $region13: #{tpu_custom_call.1} parent=5 // pred_check
        %p81 = pneg %p80
      $region14: #{tpu_custom_call.1} parent=5 // pred_check_branch
        %83 = sbr.rel (%p81) target = $region16
      $region15: #{tpu_custom_call.1} parent=5 // pred_region
        // Predicated region
        $region17: #{tpu_custom_call.1} parent=15 // pred_check
          %p84 = pneg %p33
        $region18: #{tpu_custom_call.1} parent=15 // pred_check_branch
          %86 = sbr.rel (%p84) target = $region20
        $region19: #{tpu_custom_call.1} parent=15 // pred_region
          %s87 = sand.u32 %s23, 1
          %s88 = scalar_lea.sflag [#allocation3], %s87
          %s89 = sand.u32 %s23, 1
          %s90 = smul.addr %s89, 16
          %s91 = scalar_lea.vmem [#allocation2], %s90
          %s93 = ssub.s32 256, 256
          %94 = vsyncadd %s88, %s93
          %s95 = smul.addr %s13, 2
          %s96 = smul.addr %s95, 128
          %s97 = scalar_lea.hbm %s0, %s96
          %s99 = sshll.u32 %s91, 4
          %s100 = int_to_ptr.vmem [resolvable:$true] %s99
          %102 = dma.hbm_to_vmem [thread:$0]  %s97, 256, %s100, %s88
        $region20: #{tpu_custom_call.1} parent=15 // pred_fallthru
          _
      $region16: #{tpu_custom_call.1} parent=5 // pred_fallthru
        _
      %p103 = scmp.le.s32.totalorder 1, %s13
      %p104 = scmp.lt.s32.totalorder %s13, 3
      %p105 = pnand %p103, %p104
      %p106 = pneg %p105
      // Predicated region
      $region21: #{tpu_custom_call.1} parent=5 // pred_check
        _
      $region22: #{tpu_custom_call.1} parent=5 // pred_check_branch
        %108 = sbr.rel (%p105) target = $region24
      $region23: #{tpu_custom_call.1} parent=5 // pred_region
        %s109 = ssub.s32 %s13, 1
        %s110 = sand.u32 %s26, 1
        %s111 = scalar_lea.sflag [#allocation3], %s110
        %s112 = sand.u32 %s26, 1
        %s113 = smul.addr %s112, 16
        %s114 = scalar_lea.vmem [#allocation2], %s113
        // Predicated region
        $region25: #{tpu_custom_call.1} parent=23 // pred_check
          %p115 = pneg %p39
        $region26: #{tpu_custom_call.1} parent=23 // pred_check_branch
          %117 = sbr.rel (%p115) target = $region28
        $region27: #{tpu_custom_call.1} parent=23 // pred_region
          %118 = dma.done %s111, 256
        $region28: #{tpu_custom_call.1} parent=23 // pred_fallthru
          _
        %s119 = sand.u32 %s26, 1
        %s120 = scalar_lea.sflag [#allocation3], %s119
        %s121 = sand.u32 %s26, 1
        %s122 = smul.addr %s121, 16
        %s123 = scalar_lea.vmem [#allocation2], %s122
        %p124 = pneg %p39
        %p125 = pneg %p36
        %p126 = pneg %p65
        %p127 = pneg %p62
        %s128 = sand.u32 %s52, 1
        %s129 = scalar_lea.sflag [#allocation4], %s128
        %s130 = sand.u32 %s52, 1
        %s131 = smul.addr %s130, 16
        %s132 = scalar_lea.vmem [#allocation5], %s131
        %v133 = vld [vmem:[%s114] sm:$0xff]
        %v134 = vld [vmem:[%s114 + $0x8] sm:$0xff]
        %v137 = vrot.slane %v133, 7
        %v138 = vrot.slane %v134, 7
        %v141 = vmul.f32 %v133, %v137
        %v142 = vmul.f32 %v134, %v138
        %v143 = vrot.slane %v133, 6
        %v144 = vrot.slane %v134, 6
        %v147 = vmul.f32 %v133, %v143
        %v148 = vmul.f32 %v134, %v144
        %v151 = vrot.slane %v141, 7
        %v152 = vrot.slane %v142, 7
        %vm155 = vcmp.gt.f32.partialorder %v147, %v151
        %vm156 = vcmp.gt.f32.partialorder %v148, %v152
        %v157 = vsel %vm155, %v147, %v151
        %v158 = vsel %vm156, %v148, %v152
        %v159 = vsel %vm155, 1.0, 0.0
        %v160 = vsel %vm156, 1.0, 0.0
        %v161 = vrot.slane %v133, 5
        %v162 = vrot.slane %v134, 5
        %v165 = vmul.f32 %v133, %v161
        %v166 = vmul.f32 %v134, %v162
        %v169 = vrot.slane %v157, 7
        %v170 = vrot.slane %v158, 7
        %vm173 = vcmp.gt.f32.partialorder %v165, %v169
        %vm174 = vcmp.gt.f32.partialorder %v166, %v170
        %v175 = vsel %vm173, %v165, %v169
        %v176 = vsel %vm174, %v166, %v170
        %v179 = vrot.slane %v159, 7
        %v180 = vrot.slane %v160, 7
        %v183 = vsel %vm173, 2.0, %v179
        %v184 = vsel %vm174, 2.0, %v180
        %vm185 = vcmp.gt.f32.partialorder %v133, 0.25
        %vm186 = vcmp.gt.f32.partialorder %v134, 0.25
        %vm187 = vcmp.gt.f32.partialorder %v175, 0.25
        %vm188 = vcmp.gt.f32.partialorder %v176, 0.25
        %v189 = vsel %vm187, 1, 0
        %v190 = vsel %vm188, 1, 0
        %v191 = vrot.slane %v189, 3
        %v192 = vrot.slane %v190, 3
        %vm193 = vcmp.ne.s32.totalorder %v191, 0
        %vm194 = vcmp.ne.s32.totalorder %v192, 0
        %vm195 = vmand %vm185, %vm193
        %vm196 = vmand %vm186, %vm194
        %v199 = vrot.slane %v175, 3
        %v200 = vrot.slane %v176, 3
        %v203 = vsel %vm195, %v199, -1.0
        %v204 = vsel %vm196, %v200, -1.0
        %v205 = vmul.f32 %v133, 0.5
        %v206 = vmul.f32 %v134, 0.5
        %v209 = vrot.slane %v205, 2
        %v210 = vrot.slane %v206, 2
        %v213 = vsub.f32 %v133, %v209
        %v214 = vsub.f32 %v134, %v210
        %v217 = vcombine.low %v213, %v214
        %v219 = vunpack.c.l.s4 1966171168
        %v220 = vunpack.c.0.s8 %v219
        %v221 = vlaneseq
        %v222 = vshrl.u32 %v221, 7
        %v223 = vsub.s32 %v220, %v222
        %v224 = vrot.slane %v217, %v223
        %v226 = vunpack.c.l.s4 1966171168
        %v227 = vunpack.c.0.s8 %v226
        %v228 = vlaneseq
        %v229 = vshrl.u32 %v228, 7
        %v230 = vsub.s32 %v227, %v229
        %v231 = vrot.slane %v224, %v230
        %v233 = vlaneseq
        %vm234 = vcmp.ge.s32.totalorder %v233, 0
        %vm235 = vcmp.lt.s32.totalorder %v233, 256
        %vm236 = vmand %vm234, %vm235
        %237 = vst.msk [vmem:[%s132] ss:$8 sm:$0x3] %vm236, %v231
        %238 = vst.msk [vmem:[%s132] ss:$8 sm:$0x0] %vm236, %v231
        %v239 = vcombine.high %v224, %v224
        %v241 = vunpack.c.l.s4 1966171168
        %v242 = vunpack.c.0.s8 %v241
        %v243 = vlaneseq
        %v244 = vshrl.u32 %v243, 7
        %v245 = vsub.s32 %v242, %v244
        %v246 = vrot.slane %v239, %v245
        %s248 = scalar_lea.vmem %s132, 1 [#allocation5]
        %249 = vst.msk [vmem:[%s248] ss:$8 sm:$0x3] %vm236, %v246
        %250 = vst.msk [vmem:[%s248] ss:$8 sm:$0x0] %vm236, %v246
        %v251 = vadd.f32 %v133, %v209
        %v252 = vadd.f32 %v134, %v210
        %v255 = vcombine.low %v251, %v252
        %v257 = vunpack.c.l.s4 1966171168
        %v258 = vunpack.c.0.s8 %v257
        %v259 = vlaneseq
        %v260 = vshrl.u32 %v259, 7
        %v261 = vsub.s32 %v258, %v260
        %v262 = vrot.slane %v255, %v261
        %v264 = vunpack.c.l.s4 1966171168
        %v265 = vunpack.c.0.s8 %v264
        %v266 = vlaneseq
        %v267 = vshrl.u32 %v266, 7
        %v268 = vsub.s32 %v265, %v267
        %v269 = vrot.slane %v262, %v268
        %s271 = scalar_lea.vmem %s132, 2 [#allocation5]
        %272 = vst.msk [vmem:[%s271] ss:$8 sm:$0x3] %vm236, %v269
        %273 = vst.msk [vmem:[%s271] ss:$8 sm:$0x0] %vm236, %v269
        %v274 = vcombine.high %v262, %v262
        %v276 = vunpack.c.l.s4 1966171168
        %v277 = vunpack.c.0.s8 %v276
        %v278 = vlaneseq
        %v279 = vshrl.u32 %v278, 7
        %v280 = vsub.s32 %v277, %v279
        %v281 = vrot.slane %v274, %v280
        %s283 = scalar_lea.vmem %s132, 3 [#allocation5]
        %284 = vst.msk [vmem:[%s283] ss:$8 sm:$0x3] %vm236, %v281
        %285 = vst.msk [vmem:[%s283] ss:$8 sm:$0x0] %vm236, %v281
        %v288 = vcombine.high %v203, %v204
        %v290 = vunpack.c.l.s4 1966171168
        %v291 = vunpack.c.0.s8 %v290
        %v292 = vlaneseq
        %v293 = vshrl.u32 %v292, 7
        %v294 = vsub.s32 %v291, %v293
        %v295 = vrot.slane %v288, %v294
        %v297 = vunpack.c.l.s4 1966171168
        %v298 = vunpack.c.0.s8 %v297
        %v299 = vlaneseq
        %v300 = vshrl.u32 %v299, 7
        %v301 = vsub.s32 %v298, %v300
        %v302 = vrot.slane %v295, %v301
        %s304 = scalar_lea.vmem %s132, 4 [#allocation5]
        %305 = vst.msk [vmem:[%s304] ss:$8 sm:$0x3] %vm236, %v302
        %306 = vst.msk [vmem:[%s304] ss:$8 sm:$0x0] %vm236, %v302
        %v309 = vcombine.high %v183, %v184
        %v311 = vunpack.c.l.s4 1966171168
        %v312 = vunpack.c.0.s8 %v311
        %v313 = vlaneseq
        %v314 = vshrl.u32 %v313, 7
        %v315 = vsub.s32 %v312, %v314
        %v316 = vrot.slane %v309, %v315
        %v317 = vcombine.high %v316, %v316
        %v319 = vunpack.c.l.s4 1966171168
        %v320 = vunpack.c.0.s8 %v319
        %v321 = vlaneseq
        %v322 = vshrl.u32 %v321, 7
        %v323 = vsub.s32 %v320, %v322
        %v324 = vrot.slane %v317, %v323
        %v325 = vcombine.high %v324, %v324
        %s327 = scalar_lea.vmem %s132, 5 [#allocation5]
        %328 = vst.msk [vmem:[%s327] ss:$8 sm:$0x3] %vm236, %v325
        %329 = vst.msk [vmem:[%s327] ss:$8 sm:$0x0] %vm236, %v325
        %330 = vst [vmem:[%s132] sm:$0xc0] 0.0
        %331 = vst [vmem:[%s132 + $0x8] sm:$0xc0] 0.0
        %s332 = sand.u32 %s52, 1
        %s333 = scalar_lea.sflag [#allocation4], %s332
        %s334 = sand.u32 %s52, 1
        %s335 = smul.addr %s334, 16
        %s336 = scalar_lea.vmem [#allocation5], %s335
        // Predicated region
        $region29: #{tpu_custom_call.1} parent=23 // pred_check
          %p337 = pneg %p62
        $region30: #{tpu_custom_call.1} parent=23 // pred_check_branch
          %339 = sbr.rel (%p337) target = $region32
        $region31: #{tpu_custom_call.1} parent=23 // pred_region
          %s341 = ssub.s32 256, 256
          %342 = vsyncadd %s333, %s341
          %s343 = smul.addr %s18, 2
          %s344 = smul.addr %s343, 128
          %s345 = scalar_lea.hbm %s1, %s344
          %s347 = sshll.u32 %s336, 4
          %s348 = int_to_ptr.vmem [resolvable:$true] %s347
          %350 = dma.vmem_to_hbm [thread:$0]  %s348, 256, %s345, %s333
        $region32: #{tpu_custom_call.1} parent=23 // pred_fallthru
          _
      $region24: #{tpu_custom_call.1} parent=5 // pred_fallthru
        _
      %p351 = scmp.le.s32.totalorder 2, %s13
      // Predicated region
      $region33: #{tpu_custom_call.1} parent=5 // pred_check
        %p352 = pneg %p351
      $region34: #{tpu_custom_call.1} parent=5 // pred_check_branch
        %354 = sbr.rel (%p352) target = $region36
      $region35: #{tpu_custom_call.1} parent=5 // pred_region
        %s355 = ssub.s32 %s13, 2
        // Predicated region
        $region37: #{tpu_custom_call.1} parent=35 // pred_check
          %p356 = pneg %p68
        $region38: #{tpu_custom_call.1} parent=35 // pred_check_branch
          %358 = sbr.rel (%p356) target = $region40
        $region39: #{tpu_custom_call.1} parent=35 // pred_region
          %s359 = sand.u32 %s53, 1
          %s360 = scalar_lea.sflag [#allocation4], %s359
          %s361 = sand.u32 %s53, 1
          %s362 = smul.addr %s361, 16
          %s363 = scalar_lea.vmem [#allocation5], %s362
          %364 = dma.done %s360, 256
        $region40: #{tpu_custom_call.1} parent=35 // pred_fallthru
          _
      $region36: #{tpu_custom_call.1} parent=5 // pred_fallthru
        _
    $region6: #{tpu_custom_call.1} parent=1 // loop_footer
      %s17 = sadd.s32 1, %s13
    $region7: #{tpu_custom_call.1} parent=1 // loop_footer_branch
      %12 = sbr.rel target = $region3
    $region8: #{tpu_custom_call.1} parent=1 // loop_exit
      _
    %365 = vsyncpa [#allocation3], 1
    %s366 = scalar_lea.sflag [#allocation3], 1
    %367 = vsyncpa %s366, 1
    %368 = vsyncpa [#allocation4], 1
    %s369 = scalar_lea.sflag [#allocation4], 1
    %370 = vsyncpa %s369, 1

</llo_original>
